<compile_context>
chip_gen: v7x
topology: tpu7x:2x2x1
jax: 0.10.0
libtpu: 0.0.40
codegen_flags: <defaults>
</compile_context>

<pallas_src>
import numpy as np
import jax
import jax.numpy as jnp
from jax.experimental import pallas as pl
from jax.experimental.pallas import tpu as pltpu


def _copy_kernel(x_ref, o_ref):
    # Pure identity copy of a lane-dense (tile_rows, width) tile.
    o_ref[...] = x_ref[...]


# Keep in+out double-buffered tiles comfortably inside every chip's scoped VMEM.
_MAX_TILE_BYTES = 2 * 1024 * 1024  # 2 MiB per tile buffer


def _pick_lane_width(total):
    # Largest lane-dense width (multiple of 128) that divides the element count.
    for w in (1024, 512, 256, 128):
        if total % w == 0:
            return w
    return None


def _pick_tile_rows(rows, itemsize, width):
    max_rows = max(_MAX_TILE_BYTES // (width * itemsize), 8)
    if rows <= max_rows:
        return rows  # block == full dim along rows: always legal, single tile
    # Largest multiple-of-8 divisor of `rows` that fits the VMEM budget.
    for t in range(max_rows - (max_rows % 8), 7, -8):
        if rows % t == 0:
            return t
    return rows  # fallback: whole-array block (legal; only for awkward sizes)


class Reshape:
    """JAX/Pallas port of the PyTorch Reshape(nn.Module): x.view(self.shape)."""

    def __init__(self, *args):
        self.shape = tuple(args)

    def __call__(self, x):
        out_shape = self.shape
        # Resolve a single -1 (torch.view allows it).
        if -1 in out_shape:
            known = int(np.prod([d for d in out_shape if d != -1]))
            out_shape = tuple(x.size // known if d == -1 else d for d in out_shape)
        assert int(np.prod(out_shape)) == x.size, "view size mismatch"

        total = int(x.size)
        itemsize = x.dtype.itemsize

        # Flatten to a lane-dense 2-D slab in the wrapper (metadata-only in XLA,
        # identical C-order semantics to torch.view on a contiguous tensor).
        width = _pick_lane_width(total)
        if width is None:
            rows, width, tile_rows = 1, total, 1  # degenerate sizes: 1 full block
        else:
            rows = total // width
            tile_rows = _pick_tile_rows(rows, itemsize, width)

        x2 = jnp.reshape(x, (rows, width))
        grid = (rows // tile_rows,)

        y2 = pl.pallas_call(
            _copy_kernel,
            out_shape=jax.ShapeDtypeStruct((rows, width), x.dtype),
            grid=grid,
            in_specs=[pl.BlockSpec((tile_rows, width), lambda i: (i, 0))],
            out_specs=pl.BlockSpec((tile_rows, width), lambda i: (i, 0)),
            compiler_params=pltpu.CompilerParams(
                dimension_semantics=("parallel",)),
            cost_estimate=pl.CostEstimate(
                flops=0,
                transcendentals=0,
                bytes_accessed=2 * total * itemsize),
            # input_output_aliases={0: 0} would drop the second HBM buffer when
            # the caller can donate x; left off here so x stays usable after.
        )(x2)

        # Final reshape to the requested target shape (metadata-only).
        return jnp.reshape(y2, out_shape)


if __name__ == "__main__":
    key = jax.random.PRNGKey(0)
    # Small NCHW input consistent with a VAE usage: (batch=2, channels=4, H=16, W=16)
    x = jax.random.normal(key, (2, 4, 16, 16), dtype=jnp.float32)

    # Typical VAE use-case: flatten channel+spatial dims before a Linear layer.
    reshape = Reshape(2, 4 * 16 * 16)

    y = reshape(x)
    jax.block_until_ready(y)

    # Correctness check against the pure-JAX (== torch.view on contiguous) reference.
    ref = jnp.reshape(x, (2, 4 * 16 * 16))
    assert y.shape == (2, 1024)
    assert y.dtype == x.dtype
    np.testing.assert_allclose(np.asarray(y), np.asarray(ref), rtol=0, atol=0)

    # Also exercise the -1 resolution path (torch.view semantics).
    y2 = Reshape(-1, 256)(x)
    jax.block_until_ready(y2)
    np.testing.assert_allclose(np.asarray(y2), np.asarray(jnp.reshape(x, (8, 256))),
                               rtol=0, atol=0)

    print("KERNEL_OK")
</pallas_src>

<mosaic_0001>
module attributes {stable_mosaic.version = 11 : i64} {
  func.func @_copy_kernel(%arg0: i32, %arg1: memref<2x1024xf32, #tpu.memory_space<vmem>>, %arg2: memref<2x1024xf32, #tpu.memory_space<vmem>>) attributes {dimension_semantics = [#tpu.dimension_semantics<parallel>], iteration_bounds = array<i64: 1>, scalar_prefetch = 0 : i64, scratch_operands = 0 : i64, tpu.core_type = #tpu.core_type<tc>, window_params = [{transform_indices = @transform_0, window_bounds = array<i64: 2, 1024>}, {transform_indices = @transform_1, window_bounds = array<i64: 2, 1024>}]} {
    %c0 = arith.constant 0 : index
    %c0_0 = arith.constant 0 : index
    %0 = vector.load %arg1[%c0, %c0_0] : memref<2x1024xf32, #tpu.memory_space<vmem>>, vector<2x1024xf32>
    %c0_1 = arith.constant 0 : index
    %c0_2 = arith.constant 0 : index
    %1 = vector.load %arg2[%c0_1, %c0_2] : memref<2x1024xf32, #tpu.memory_space<vmem>>, vector<2x1024xf32>
    tpu.vector_store %arg2[%c0_1, %c0_2], %0 {strides = array<i32>} : memref<2x1024xf32, #tpu.memory_space<vmem>>, vector<2x1024xf32>,
    return
  }
  func.func @transform_0(%arg0: i32) -> (i32, i32) {
    %c0_i32 = arith.constant 0 : i32
    %c0_i32_0 = arith.constant 0 : i32
    return %arg0, %c0_i32 : i32, i32
  }
  func.func @transform_1(%arg0: i32) -> (i32, i32) {
    %c0_i32 = arith.constant 0 : i32
    %c0_i32_0 = arith.constant 0 : i32
    return %arg0, %c0_i32 : i32, i32
  }
}

</mosaic_0001>

<llo_original>
// kernel: tpu_custom_call.1
$region0: #{tpu_custom_call.1}
  #allocation0 [shape = 'u32[]', space=smem, size = 0x4, offset = 0x4, fixed_abs, tag = 'smem constant byte address 0x4 - core index']
  #allocation1 [shape = 'u32[144,128]{1,0:T(1,128)}', space=vmem, size = 0x12000, scoped, tag = 'internal scratch']
  %s0 = inlined_call_operand.hbm [shape: f32[2,1024], index: 0, kind: input, shape index: {}]
  %s1 = inlined_call_operand.hbm [shape: f32[2,1024], index: 1, kind: output, shape index: {}]
  %s2 = sld [smem:[#allocation0]]
  $region18: #{tpu_custom_call.1} parent=0
    _
  %s4 = ssub.s32 1, %s2
  %s5 = scalar_select 0, %s4, %s2
  $region1: #{tpu_custom_call.1} parent=0
    #allocation2 [shape = 'u8[8192]{0}', space=vmem, size = 0x2000, scoped, tag = 'input window, operand 0, single buffered']
    #allocation3 [shape = 's32[1]{0}', space=sflag, size = 0x4, scoped, tag = 'scoped memory for tpu_custom_call.1']
    #allocation4 [shape = 's32[1]{0}', space=sflag, size = 0x4, scoped, tag = 'scoped memory for tpu_custom_call.1']
    #allocation5 [shape = 'u8[8192]{0}', space=vmem, size = 0x2000, scoped, tag = 'output window, operand 0, single buffered']
    %6 = vsyncpa [#allocation3], 0
    %7 = vsyncpa [#allocation4], 0
    // Predicated region
    $region2: #{tpu_custom_call.1} parent=1 // pred_check
      _
    $region3: #{tpu_custom_call.1} parent=1 // pred_check_branch
      %9 = sbr.rel (0) target = $region5
    $region4: #{tpu_custom_call.1} parent=1 // pred_region
      %s11 = ssub.s32 256, 256
      %12 = vsyncadd [#allocation3], %s11
      %s14 = sshll.u32 [#allocation2], 4
      %s15 = int_to_ptr.vmem [resolvable:$true] %s14
      %17 = dma.hbm_to_vmem [thread:$0]  %s0, 256, %s15, [#allocation3]
    $region5: #{tpu_custom_call.1} parent=1 // pred_fallthru
      _
    // Predicated region
    $region6: #{tpu_custom_call.1} parent=1 // pred_check
      _
    $region7: #{tpu_custom_call.1} parent=1 // pred_check_branch
      %19 = sbr.rel (0) target = $region9
    $region8: #{tpu_custom_call.1} parent=1 // pred_region
      %20 = dma.done [#allocation3], 256
    $region9: #{tpu_custom_call.1} parent=1 // pred_fallthru
      _
    %v21 = vld [vmem:[#allocation2] sm:$0xff]
    %v22 = vld [vmem:[#allocation2 + $0x8] sm:$0xff]
    %23 = vst [vmem:[#allocation5] sm:$0xff] %v21
    %24 = vst [vmem:[#allocation5 + $0x8] sm:$0xff] %v22
    // Predicated region
    $region10: #{tpu_custom_call.1} parent=1 // pred_check
      _
    $region11: #{tpu_custom_call.1} parent=1 // pred_check_branch
      %26 = sbr.rel (0) target = $region13
    $region12: #{tpu_custom_call.1} parent=1 // pred_region
      %s28 = ssub.s32 256, 256
      %29 = vsyncadd [#allocation4], %s28
      %s31 = sshll.u32 [#allocation5], 4
      %s32 = int_to_ptr.vmem [resolvable:$true] %s31
      %34 = dma.vmem_to_hbm [thread:$0]  %s32, 256, %s1, [#allocation4]
    $region13: #{tpu_custom_call.1} parent=1 // pred_fallthru
      _
    // Predicated region
    $region14: #{tpu_custom_call.1} parent=1 // pred_check
      _
    $region15: #{tpu_custom_call.1} parent=1 // pred_check_branch
      %36 = sbr.rel (0) target = $region17
    $region16: #{tpu_custom_call.1} parent=1 // pred_region
      %37 = dma.done [#allocation4], 256
    $region17: #{tpu_custom_call.1} parent=1 // pred_fallthru
      _
    %38 = vsyncpa [#allocation3], 1
    %39 = vsyncpa [#allocation4], 1

</llo_original>
